<compile_context>
chip_gen: v6e
topology: v6e:2x2x1
jax: 0.10.0
libtpu: 0.0.40
codegen_flags: <defaults>
</compile_context>

<pallas_src>
import jax
import jax.numpy as jnp
from jax.experimental import pallas as pl
from jax.experimental.pallas import tpu as pltpu

NEG_SLOPE = 0.01                       # nn.LeakyReLU() default negative_slope


def _round_up(x, m):
    return (x + m - 1) // m * m


def _pick_tile(n, candidates):
    """Largest candidate tile that divides n (n is always a multiple of 256)."""
    for c in candidates:
        if n % c == 0:
            return c
    return candidates[-1]


def _vmem_limit_bytes():
    # v7x has 64 MiB physical VMEM per TC (vs 128 MiB on v5e/v6e). Leave
    # headroom for Mosaic's own scratch; cap at 96 MiB on the big-VMEM chips.
    try:
        cap = pltpu.get_tpu_info().vmem_capacity_bytes
    except Exception:
        cap = 64 * 1024 * 1024          # conservative: assume v7x-sized VMEM
    return max(32 * 1024 * 1024, min(cap - 16 * 1024 * 1024, 96 * 1024 * 1024))


# --------------------------------------------------------------------------
# Prologue: x_hidden = x @ W,  e = xh . a1,  f = xh . a2   (per node)
# --------------------------------------------------------------------------
def _hidden_kernel(x_ref, w_ref, a1_ref, a2_ref, xh_ref, e_ref, f_ref):
    # Keep this O(N*F*H) matmul in f32: e/f feed exp(-LeakyReLU(.)), which
    # amplifies rounding; the big O(N^2*H) matmul (pass 2) is the bf16 one.
    xh = jnp.dot(x_ref[...], w_ref[...], preferred_element_type=jnp.float32)
    xh_ref[...] = xh
    # Degenerate matvecs stay off the MXU: VPU multiply + cross-lane reduce.
    e_ref[...] = jnp.sum(xh * a1_ref[...], axis=-1, keepdims=True)   # (tm, 1)
    f_ref[...] = jnp.sum(xh * a2_ref[...], axis=-1, keepdims=True)   # (tm, 1)


def _edge_weights(e_blk, f_blk, adj_blk):
    # score[r, c] = e[r] + f[c];  attn_exp = exp(-LeakyReLU(score)) on edges.
    # Kept in f32 (safe on v5e; accuracy headroom on v6e/v7x).
    score = e_blk + f_blk                                    # (rows,1)+(1,cols)
    lrelu = jnp.where(score > 0, score, NEG_SLOPE * score)   # VPU
    return jnp.where(adj_blk != 0, jnp.exp(-lrelu), 0.0)     # EUP exp, masked


# --------------------------------------------------------------------------
# Pass 1: d[j] = sum_k adj[j,k] * exp(-lrelu(e[j] + f[k]))   (torch's j-row-sum)
# f_ref is the full f vector, resident in VMEM as (n_pad//tile_k, tile_k);
# the k-th chunk is sliced in-kernel (no per-step tiny DMA).
# --------------------------------------------------------------------------
def _make_denom_kernel(tile_k):
    del tile_k  # tile size is baked into the resident f layout

    def kernel(e_ref, f_ref, adj_ref, d_ref):
        k = pl.program_id(1)

        @pl.when(k == 0)
        def _():
            d_ref[...] = jnp.zeros_like(d_ref)

        f_blk = f_ref[pl.ds(k, 1), :]                               # (1, tile_k)
        attn = _edge_weights(e_ref[...], f_blk, adj_ref[...])       # (ti, tile_k)
        d_ref[...] += jnp.sum(attn, axis=1, keepdims=True)          # (ti, 1)

    return kernel


# --------------------------------------------------------------------------
# Pass 2: out[i,:] = sum_j attn_exp[i,j] * v[j,:],  v = xh / (d + 1e-5) in bf16
# v is pre-normalized/pre-cast once; kept fully VMEM-resident when it fits,
# streamed per-j otherwise. Accumulation goes directly into the resident f32
# output block (no scratch accumulator).
# --------------------------------------------------------------------------
def _make_out_kernel(v_resident):
    def kernel(e_ref, f_ref, adj_ref, v_ref, out_ref):
        j = pl.program_id(1)

        @pl.when(j == 0)
        def _():
            out_ref[...] = jnp.zeros_like(out_ref)

        f_blk = f_ref[pl.ds(j, 1), :]                               # (1, tile_j)
        attn = _edge_weights(e_ref[...], f_blk, adj_ref[...])       # (ti, tile_j)

        if v_resident:
            v_blk = v_ref[j]        # (tile_j, h_pad) slice of resident bf16 v
        else:
            v_blk = v_ref[0]        # streamed (1, tile_j, h_pad) bf16 block

        # Big O(N^2*H) matmul on the MXU in bf16, f32 accumulation in the
        # resident output block.
        out_ref[...] += jnp.dot(attn.astype(jnp.bfloat16), v_blk,
                                preferred_element_type=jnp.float32)

    return kernel


# --------------------------------------------------------------------------
# Wrapper
# --------------------------------------------------------------------------
def sparse_attention(x, adj, W, a):
    """Pallas TPU forward of SparseAttention (context_size=0, dim_reduce=True).

    `adj` may be float (masked per element) or already bool/int8 — pass the
    int8/bool mask from the caller to avoid re-casting the O(N^2) operand.
    """
    N, F = x.shape
    H = W.shape[1]

    # Lane-dense hidden dim; rows padded to 256-wide output tiles; reduction
    # tiles grown to 1-2K so per-step pipeline overhead is amortized and the
    # MXU sees K >= 512.
    h_pad = _round_up(H, 128)
    n_pad = _round_up(N, 256)
    tile_i = 256                                        # output-row tile
    tile_k1 = _pick_tile(n_pad, (2048, 1024, 512, 256)) # pass-1 reduction tile
    tile_j2 = _pick_tile(n_pad, (1024, 512, 256))       # pass-2 reduction tile
    gi, gk1, gj2 = n_pad // tile_i, n_pad // tile_k1, n_pad // tile_j2

    vmem_limit = _vmem_limit_bytes()

    # Padding is inert: padded adj entries are 0 (masked), padded x rows and
    # padded W/a columns are 0, so padded xh / e / f / v contribute nothing.
    xp = jnp.pad(x.astype(jnp.float32), ((0, n_pad - N), (0, 0)))
    Wp = jnp.pad(W.astype(jnp.float32), ((0, 0), (0, h_pad - H)))
    a1 = jnp.pad(a[:, :H].astype(jnp.float32), ((0, 0), (0, h_pad - H)))
    a2 = jnp.pad(a[:, H:].astype(jnp.float32), ((0, 0), (0, h_pad - H)))
    if adj.dtype == jnp.int8 or adj.dtype == jnp.bool_:
        adj_i8 = adj.astype(jnp.int8)                   # already a mask: no recast
    else:
        adj_i8 = (adj != 0).astype(jnp.int8)            # fallback for float adj
    adj_i8 = jnp.pad(adj_i8, ((0, n_pad - N), (0, n_pad - N)))

    # ---- prologue: xh, e, f ------------------------------------------------
    xh, e_col, f_col = pl.pallas_call(
        _hidden_kernel,
        out_shape=(jax.ShapeDtypeStruct((n_pad, h_pad), jnp.float32),
                   jax.ShapeDtypeStruct((n_pad, 1), jnp.float32),
                   jax.ShapeDtypeStruct((n_pad, 1), jnp.float32)),
        grid_spec=pltpu.PrefetchScalarGridSpec(
            num_scalar_prefetch=0,
            grid=(gi,),
            in_specs=[pl.BlockSpec((tile_i, F), lambda i: (i, 0)),
                      pl.BlockSpec((F, h_pad), lambda i: (0, 0)),
                      pl.BlockSpec((1, h_pad), lambda i: (0, 0)),
                      pl.BlockSpec((1, h_pad), lambda i: (0, 0))],
            out_specs=(pl.BlockSpec((tile_i, h_pad), lambda i: (i, 0)),
                       pl.BlockSpec((tile_i, 1), lambda i: (i, 0)),
                       pl.BlockSpec((tile_i, 1), lambda i: (i, 0)))),
        compiler_params=pltpu.CompilerParams(
            dimension_semantics=("parallel",),
            vmem_limit_bytes=vmem_limit),
    )(xp, Wp, a1, a2)

    # Resident lane-major copies of f, chunked to each pass's reduction tile
    # (O(N) plumbing; removes a tiny per-step DMA from both O(N^2) passes).
    f_k1 = f_col.reshape(gk1, tile_k1)
    f_j2 = f_col.reshape(gj2, tile_j2)

    # ---- pass 1: per-node denominator (fat reduction steps) -----------------
    denom = pl.pallas_call(
        _make_denom_kernel(tile_k1),
        out_shape=jax.ShapeDtypeStruct((n_pad, 1), jnp.float32),
        grid_spec=pltpu.PrefetchScalarGridSpec(
            num_scalar_prefetch=0,
            grid=(gi, gk1),
            in_specs=[pl.BlockSpec((tile_i, 1), lambda j, k: (j, 0)),        # e[j]
                      pl.BlockSpec((gk1, tile_k1), lambda j, k: (0, 0)),     # f (resident)
                      pl.BlockSpec((tile_i, tile_k1), lambda j, k: (j, k))], # adj
            out_specs=pl.BlockSpec((tile_i, 1), lambda j, k: (j, 0))),
        compiler_params=pltpu.CompilerParams(
            dimension_semantics=("parallel", "arbitrary"),
            vmem_limit_bytes=vmem_limit),
    )(e_col, f_k1, adj_i8)

    # ---- pre-normalized bf16 value matrix (computed ONCE, O(N*H)) -----------
    # Exact divide (not approx reciprocal); padded rows have xh == 0 so they
    # stay 0 regardless of denom == 0.
    v_bf16 = (xh / (denom + 1e-5)).astype(jnp.bfloat16)
    v3 = v_bf16.reshape(gj2, tile_j2, h_pad)

    # Keep v fully VMEM-resident when small enough for v7x's 64 MiB VMEM
    # (12 MiB gate leaves room for double-buffering + the int8 adj stream).
    v_resident = (n_pad * h_pad * 2) <= 12 * 1024 * 1024
    if v_resident:
        v_spec = pl.BlockSpec((gj2, tile_j2, h_pad), lambda i, j: (0, 0, 0))
    else:
        v_spec = pl.BlockSpec((1, tile_j2, h_pad), lambda i, j: (j, 0, 0))

    # ---- pass 2: normalized attention @ v ------------------------------------
    out_pad = pl.pallas_call(
        _make_out_kernel(v_resident),
        out_shape=jax.ShapeDtypeStruct((n_pad, h_pad), jnp.float32),
        grid_spec=pltpu.PrefetchScalarGridSpec(
            num_scalar_prefetch=0,
            grid=(gi, gj2),
            in_specs=[pl.BlockSpec((tile_i, 1), lambda i, j: (i, 0)),        # e[i]
                      pl.BlockSpec((gj2, tile_j2), lambda i, j: (0, 0)),     # f (resident)
                      pl.BlockSpec((tile_i, tile_j2), lambda i, j: (i, j)),  # adj
                      v_spec],                                               # v (bf16)
            out_specs=pl.BlockSpec((tile_i, h_pad), lambda i, j: (i, 0))),
        compiler_params=pltpu.CompilerParams(
            dimension_semantics=("parallel", "arbitrary"),
            vmem_limit_bytes=vmem_limit),
    )(e_col, f_j2, adj_i8, v3)

    return out_pad[:N, :H]


def xavier_uniform(key, shape, gain=1.414):
    # Matches torch.nn.init.xavier_uniform_ bound; deterministic via PRNGKey.
    fan_out, fan_in = shape
    bound = gain * (6.0 / (fan_in + fan_out)) ** 0.5
    return jax.random.uniform(key, shape, jnp.float32, -bound, bound)


if __name__ == "__main__":
    key = jax.random.PRNGKey(0)
    kx, kadj, kw, ka = jax.random.split(key, 4)

    N, F, H = 16, 32, 32                       # nodes, input_size, hidden_size
    x = jax.random.normal(kx, (N, F), jnp.float32)
    adj = (jax.random.uniform(kadj, (N, N)) < 0.4).astype(jnp.float32)
    W = xavier_uniform(kw, (F, H))             # self.W
    a = xavier_uniform(ka, (1, 2 * H))         # self.a  (context_size == 0)

    # Do the O(N^2) mask -> int8 conversion ONCE upstream (adj is reused
    # across layers/steps in the real model).
    adj_i8 = (adj != 0).astype(jnp.int8)

    out = jax.block_until_ready(sparse_attention(x, adj_i8, W, a))

    # Pure-JAX reference mirroring the PyTorch forward exactly (full f32 matmuls).
    hi = jax.lax.Precision.HIGHEST
    xh = jnp.dot(x, W, precision=hi)
    e = jnp.dot(xh, a[0, :H], precision=hi)
    f = jnp.dot(xh, a[0, H:], precision=hi)
    score = e[:, None] + f[None, :]
    lrelu = jnp.where(score > 0, score, NEG_SLOPE * score)
    attn_exp = jnp.where(adj != 0, jnp.exp(-lrelu), 0.0)
    row_sum = attn_exp.sum(axis=1)
    attn = attn_exp / (row_sum[None, :] + 1e-5)   # torch reshape => denom is row_sum[j]
    ref = jnp.dot(attn, xh, precision=hi)

    assert out.shape == (N, H)
    assert jnp.allclose(out, ref, rtol=1e-2, atol=1e-2), float(
        jnp.max(jnp.abs(out - ref)))
    print("KERNEL_OK")
</pallas_src>

<mosaic_0001>
module attributes {stable_mosaic.version = 11 : i64} {
  func.func @_hidden_kernel(%arg0: i32, %arg1: memref<256x32xf32, #tpu.memory_space<vmem>>, %arg2: memref<32x128xf32, #tpu.memory_space<vmem>>, %arg3: memref<1x128xf32, #tpu.memory_space<vmem>>, %arg4: memref<1x128xf32, #tpu.memory_space<vmem>>, %arg5: memref<256x128xf32, #tpu.memory_space<vmem>>, %arg6: memref<256x1xf32, #tpu.memory_space<vmem>>, %arg7: memref<256x1xf32, #tpu.memory_space<vmem>>) attributes {dimension_semantics = [#tpu.dimension_semantics<parallel>], iteration_bounds = array<i64: 1>, scalar_prefetch = 0 : i64, scratch_operands = 0 : i64, tpu.core_type = #tpu.core_type<tc>, window_params = [{transform_indices = @transform_0, window_bounds = array<i64: 256, 32>}, {pipeline_mode = #tpu.pipeline_mode<synchronous>, transform_indices = @transform_1, window_bounds = array<i64: 32, 128>}, {pipeline_mode = #tpu.pipeline_mode<synchronous>, transform_indices = @transform_2, window_bounds = array<i64: 1, 128>}, {pipeline_mode = #tpu.pipeline_mode<synchronous>, transform_indices = @transform_3, window_bounds = array<i64: 1, 128>}, {transform_indices = @transform_4, window_bounds = array<i64: 256, 128>}, {transform_indices = @transform_5, window_bounds = array<i64: 256, 1>}, {transform_indices = @transform_6, window_bounds = array<i64: 256, 1>}]} {
    %c0 = arith.constant 0 : index
    %c0_0 = arith.constant 0 : index
    %0 = vector.load %arg1[%c0, %c0_0] : memref<256x32xf32, #tpu.memory_space<vmem>>, vector<256x32xf32>
    %c0_1 = arith.constant 0 : index
    %c0_2 = arith.constant 0 : index
    %1 = vector.load %arg2[%c0_1, %c0_2] : memref<32x128xf32, #tpu.memory_space<vmem>>, vector<32x128xf32>
    %cst = arith.constant dense<0.000000e+00> : vector<256x128xf32>
    %2 = tpu.matmul %0, %1, %cst {dimension_numbers = #tpu.dot_dimension_numbers<[1], [0], [0], [1], [0, 0, 1, 1], [], []>} : vector<256x32xf32>, vector<32x128xf32>, vector<256x128xf32> -> vector<256x128xf32>
    %c0_3 = arith.constant 0 : index
    %c0_4 = arith.constant 0 : index
    %3 = vector.load %arg5[%c0_3, %c0_4] : memref<256x128xf32, #tpu.memory_space<vmem>>, vector<256x128xf32>
    tpu.vector_store %arg5[%c0_3, %c0_4], %2 {strides = array<i32>} : memref<256x128xf32, #tpu.memory_space<vmem>>, vector<256x128xf32>,
    %c0_5 = arith.constant 0 : index
    %c0_6 = arith.constant 0 : index
    %4 = vector.load %arg3[%c0_5, %c0_6] : memref<1x128xf32, #tpu.memory_space<vmem>>, vector<1x128xf32>
    %5 = vector.broadcast %4 : vector<1x128xf32> to vector<256x128xf32>
    %6 = arith.mulf %2, %5 : vector<256x128xf32>
    %cst_7 = arith.constant dense<0.000000e+00> : vector<256xf32>
    %7 = vector.multi_reduction <add>, %6, %cst_7 [1] : vector<256x128xf32> to vector<256xf32>
    %8 = vector.shape_cast %7 : vector<256xf32> to vector<256x1xf32>
    %c0_8 = arith.constant 0 : index
    %c0_9 = arith.constant 0 : index
    %9 = vector.load %arg6[%c0_8, %c0_9] : memref<256x1xf32, #tpu.memory_space<vmem>>, vector<256x1xf32>
    tpu.vector_store %arg6[%c0_8, %c0_9], %8 {strides = array<i32>} : memref<256x1xf32, #tpu.memory_space<vmem>>, vector<256x1xf32>,
    %c0_10 = arith.constant 0 : index
    %c0_11 = arith.constant 0 : index
    %10 = vector.load %arg4[%c0_10, %c0_11] : memref<1x128xf32, #tpu.memory_space<vmem>>, vector<1x128xf32>
    %11 = vector.broadcast %10 : vector<1x128xf32> to vector<256x128xf32>
    %12 = arith.mulf %2, %11 : vector<256x128xf32>
    %cst_12 = arith.constant dense<0.000000e+00> : vector<256xf32>
    %13 = vector.multi_reduction <add>, %12, %cst_12 [1] : vector<256x128xf32> to vector<256xf32>
    %14 = vector.shape_cast %13 : vector<256xf32> to vector<256x1xf32>
    %c0_13 = arith.constant 0 : index
    %c0_14 = arith.constant 0 : index
    %15 = vector.load %arg7[%c0_13, %c0_14] : memref<256x1xf32, #tpu.memory_space<vmem>>, vector<256x1xf32>
    tpu.vector_store %arg7[%c0_13, %c0_14], %14 {strides = array<i32>} : memref<256x1xf32, #tpu.memory_space<vmem>>, vector<256x1xf32>,
    return
  }
  func.func @transform_0(%arg0: i32) -> (i32, i32) {
    %c0_i32 = arith.constant 0 : i32
    %c0_i32_0 = arith.constant 0 : i32
    return %arg0, %c0_i32 : i32, i32
  }
  func.func @transform_1(%arg0: i32) -> (i32, i32) {
    %c0_i32 = arith.constant 0 : i32
    %c0_i32_0 = arith.constant 0 : i32
    %c0_i32_1 = arith.constant 0 : i32
    return %c0_i32, %c0_i32_0 : i32, i32
  }
  func.func @transform_2(%arg0: i32) -> (i32, i32) {
    %c0_i32 = arith.constant 0 : i32
    %c0_i32_0 = arith.constant 0 : i32
    %c0_i32_1 = arith.constant 0 : i32
    return %c0_i32, %c0_i32_0 : i32, i32
  }
  func.func @transform_3(%arg0: i32) -> (i32, i32) {
    %c0_i32 = arith.constant 0 : i32
    %c0_i32_0 = arith.constant 0 : i32
    %c0_i32_1 = arith.constant 0 : i32
    return %c0_i32, %c0_i32_0 : i32, i32
  }
  func.func @transform_4(%arg0: i32) -> (i32, i32) {
    %c0_i32 = arith.constant 0 : i32
    %c0_i32_0 = arith.constant 0 : i32
    return %arg0, %c0_i32 : i32, i32
  }
  func.func @transform_5(%arg0: i32) -> (i32, i32) {
    %c0_i32 = arith.constant 0 : i32
    %c0_i32_0 = arith.constant 0 : i32
    return %arg0, %c0_i32 : i32, i32
  }
  func.func @transform_6(%arg0: i32) -> (i32, i32) {
    %c0_i32 = arith.constant 0 : i32
    %c0_i32_0 = arith.constant 0 : i32
    return %arg0, %c0_i32 : i32, i32
  }
}

</mosaic_0001>

<llo_original>
// kernel: tpu_custom_call.1
$region0: #{tpu_custom_call.1}
  #allocation0 [shape = 'u32[]', space=smem, size = 0x4, offset = 0x4, fixed_abs, tag = 'smem constant byte address 0x4 - core index']
  #allocation1 [shape = 'u32[144,128]{1,0:T(1,128)}', space=vmem, size = 0x12000, scoped, tag = 'internal scratch']
  %s0 = inlined_call_operand.vmem [shape: f32[256,32], index: 0, kind: input, shape index: {}]
  %s1 = inlined_call_operand.vmem [shape: f32[32,128], index: 1, kind: input, shape index: {}]
  %s2 = inlined_call_operand.vmem [shape: f32[1,128], index: 2, kind: input, shape index: {}]
  %s3 = inlined_call_operand.vmem [shape: f32[1,128], index: 3, kind: input, shape index: {}]
  %s4 = inlined_call_operand.hbm [shape: f32[256,128], index: 4, kind: output, shape index: {0}]
  %s5 = inlined_call_operand.vmem [shape: f32[256,1], index: 5, kind: output, shape index: {1}]
  %s6 = inlined_call_operand.vmem [shape: f32[256,1], index: 6, kind: output, shape index: {2}]
  %7 = xla_tuple %s4, %s5, %s6
  %s8 = sld [smem:[#allocation0]]
  $region42: #{tpu_custom_call.1} parent=0
    _
  %s10 = ssub.s32 1, %s8
  %s11 = scalar_select 0, %s10, %s8
  $region1: #{tpu_custom_call.1} parent=0
    #allocation2 [shape = 'u8[131072]{0}', space=vmem, size = 0x20000, scoped, tag = 'output window, operand 0, single buffered']
    #allocation3 [shape = 's32[1]{0}', space=sflag, size = 0x4, scoped, tag = 'scoped memory for tpu_custom_call.1']
    %12 = vsyncpa [#allocation3], 0
    // Predicated region
    $region2: #{tpu_custom_call.1} parent=1 // pred_check
      _
    $region3: #{tpu_custom_call.1} parent=1 // pred_check_branch
      %14 = sbr.rel (0) target = $region5
    $region4: #{tpu_custom_call.1} parent=1 // pred_region
      _
    $region5: #{tpu_custom_call.1} parent=1 // pred_fallthru
      _
    // Predicated region
    $region6: #{tpu_custom_call.1} parent=1 // pred_check
      _
    $region7: #{tpu_custom_call.1} parent=1 // pred_check_branch
      %16 = sbr.rel (0) target = $region9
    $region8: #{tpu_custom_call.1} parent=1 // pred_region
      _
    $region9: #{tpu_custom_call.1} parent=1 // pred_fallthru
      _
    // Predicated region
    $region10: #{tpu_custom_call.1} parent=1 // pred_check
      _
    $region11: #{tpu_custom_call.1} parent=1 // pred_check_branch
      %18 = sbr.rel (0) target = $region13
    $region12: #{tpu_custom_call.1} parent=1 // pred_region
      _
    $region13: #{tpu_custom_call.1} parent=1 // pred_fallthru
      _
    // Predicated region
    $region14: #{tpu_custom_call.1} parent=1 // pred_check
      _
    $region15: #{tpu_custom_call.1} parent=1 // pred_check_branch
      %20 = sbr.rel (0) target = $region17
    $region16: #{tpu_custom_call.1} parent=1 // pred_region
      _
    $region17: #{tpu_custom_call.1} parent=1 // pred_fallthru
      _
    %v21 = vld [vmem:[%s0] sm:$0xff]
    %v22 = vld [vmem:[%s0 + $0x8] sm:$0xff]
    %v23 = vld [vmem:[%s0 + $0x10] sm:$0xff]
    %v24 = vld [vmem:[%s0 + $0x18] sm:$0xff]
    %v25 = vld [vmem:[%s0 + $0x20] sm:$0xff]
    %v26 = vld [vmem:[%s0 + $0x28] sm:$0xff]
    %v27 = vld [vmem:[%s0 + $0x30] sm:$0xff]
    %v28 = vld [vmem:[%s0 + $0x38] sm:$0xff]
    %v29 = vld [vmem:[%s0 + $0x40] sm:$0xff]
    %v30 = vld [vmem:[%s0 + $0x48] sm:$0xff]
    %v31 = vld [vmem:[%s0 + $0x50] sm:$0xff]
    %v32 = vld [vmem:[%s0 + $0x58] sm:$0xff]
    %v33 = vld [vmem:[%s0 + $0x60] sm:$0xff]
    %v34 = vld [vmem:[%s0 + $0x68] sm:$0xff]
    %v35 = vld [vmem:[%s0 + $0x70] sm:$0xff]
    %v36 = vld [vmem:[%s0 + $0x78] sm:$0xff]
    %v37 = vld [vmem:[%s0 + $0x80] sm:$0xff]
    %v38 = vld [vmem:[%s0 + $0x88] sm:$0xff]
    %v39 = vld [vmem:[%s0 + $0x90] sm:$0xff]
    %v40 = vld [vmem:[%s0 + $0x98] sm:$0xff]
    %v41 = vld [vmem:[%s0 + $0xa0] sm:$0xff]
    %v42 = vld [vmem:[%s0 + $0xa8] sm:$0xff]
    %v43 = vld [vmem:[%s0 + $0xb0] sm:$0xff]
    %v44 = vld [vmem:[%s0 + $0xb8] sm:$0xff]
    %v45 = vld [vmem:[%s0 + $0xc0] sm:$0xff]
    %v46 = vld [vmem:[%s0 + $0xc8] sm:$0xff]
    %v47 = vld [vmem:[%s0 + $0xd0] sm:$0xff]
    %v48 = vld [vmem:[%s0 + $0xd8] sm:$0xff]
    %v49 = vld [vmem:[%s0 + $0xe0] sm:$0xff]
    %v50 = vld [vmem:[%s0 + $0xe8] sm:$0xff]
    %v51 = vld [vmem:[%s0 + $0xf0] sm:$0xff]
    %v52 = vld [vmem:[%s0 + $0xf8] sm:$0xff]
    %v53 = vld [vmem:[%s1] sm:$0xff]
    %v54 = vld [vmem:[%s1 + $0x8] sm:$0xff]
    %v55 = vld [vmem:[%s1 + $0x10] sm:$0xff]
    %v56 = vld [vmem:[%s1 + $0x18] sm:$0xff]
    %vm57 = vcmask 261120
    %v59 = vsel %vm57, %v21, 0
    %v62 = vsel %vm57, %v22, 0
    %v65 = vsel %vm57, %v23, 0
    %v68 = vsel %vm57, %v24, 0
    %v71 = vsel %vm57, %v25, 0
    %v74 = vsel %vm57, %v26, 0
    %v77 = vsel %vm57, %v27, 0
    %v80 = vsel %vm57, %v28, 0
    %v83 = vsel %vm57, %v29, 0
    %v86 = vsel %vm57, %v30, 0
    %v89 = vsel %vm57, %v31, 0
    %v92 = vsel %vm57, %v32, 0
    %v95 = vsel %vm57, %v33, 0
    %v98 = vsel %vm57, %v34, 0
    %v101 = vsel %vm57, %v35, 0
    %v104 = vsel %vm57, %v36, 0
    %v107 = vsel %vm57, %v37, 0
    %v110 = vsel %vm57, %v38, 0
    %v113 = vsel %vm57, %v39, 0
    %v116 = vsel %vm57, %v40, 0
    %v119 = vsel %vm57, %v41, 0
    %v122 = vsel %vm57, %v42, 0
    %v125 = vsel %vm57, %v43, 0
    %v128 = vsel %vm57, %v44, 0
    %v131 = vsel %vm57, %v45, 0
    %v134 = vsel %vm57, %v46, 0
    %v137 = vsel %vm57, %v47, 0
    %v140 = vsel %vm57, %v48, 0
    %v143 = vsel %vm57, %v49, 0
    %v146 = vsel %vm57, %v50, 0
    %v149 = vsel %vm57, %v51, 0
    %v152 = vsel %vm57, %v52, 0
    %154 = vmatprep.subr.mxu0 0.0
    %155 = vmatpush1.msra.mxu0 0.0
    %156 = vmatprep.subr.mxu0 0.0
    %157 = vmatpush1.msra.mxu0 0.0
    %158 = vmatprep.subr.mxu0 0.0
    %159 = vmatpush1.msra.mxu0 0.0
    %160 = vmatprep.subr.mxu0 0.0
    %161 = vmatpush1.msra.mxu0 0.0
    %162 = vmatprep.subr.mxu0 0.0
    %163 = vmatpush1.msra.mxu0 0.0
    %164 = vmatprep.subr.mxu0 0.0
    %165 = vmatpush1.msra.mxu0 0.0
    %166 = vmatprep.subr.mxu0 0.0
    %167 = vmatpush1.msra.mxu0 0.0
    %168 = vmatprep.subr.mxu0 0.0
    %169 = vmatpush1.msra.mxu0 0.0
    %170 = vmatprep.subr.mxu0 0.0
    %171 = vmatpush1.msra.mxu0 0.0
    %172 = vmatprep.subr.mxu0 0.0
    %173 = vmatpush1.msra.mxu0 0.0
    %174 = vmatprep.subr.mxu0 0.0
    %175 = vmatpush1.msra.mxu0 0.0
    %176 = vmatprep.subr.mxu0 0.0
    %177 = vmatpush1.msra.mxu0 0.0
    %178 = vmatprep.subr.mxu0 0.0
    %179 = vmatpush1.msra.mxu0 %v56
    %180 = vmatprep.subr.mxu0 0.0
    %181 = vmatpush1.msra.mxu0 %v55
    %182 = vmatprep.subr.mxu0 0.0
    %183 = vmatpush1.msra.mxu0 %v54
    %184 = vmatprep.subr.mxu0 0.0
    %185 = vmatpush1.msra.mxu0 %v53
    %186 = vmatprep.subr.mxu0 0.0
    %187 = vmatpush2.msra.mxu0 0.0
    %188 = vmatprep.subr.mxu0 0.0
    %189 = vmatpush2.msra.mxu0 0.0
    %190 = vmatprep.subr.mxu0 0.0
    %191 = vmatpush2.msra.mxu0 0.0
    %192 = vmatprep.subr.mxu0 0.0
    %193 = vmatpush2.msra.mxu0 0.0
    %194 = vmatprep.subr.mxu0 0.0
    %195 = vmatpush2.msra.mxu0 0.0
    %196 = vmatprep.subr.mxu0 0.0
    %197 = vmatpush2.msra.mxu0 0.0
    %198 = vmatprep.subr.mxu0 0.0
    %199 = vmatpush2.msra.mxu0 0.0
    %200 = vmatprep.subr.mxu0 0.0
    %201 = vmatpush2.msra.mxu0 0.0
    %202 = vmatprep.subr.mxu0 0.0
    %203 = vmatpush2.msra.mxu0 0.0
    %204 = vmatprep.subr.mxu0 0.0
    %205 = vmatpush2.msra.mxu0 0.0
    %206 = vmatprep.subr.mxu0 0.0
    %207 = vmatpush2.msra.mxu0 0.0
    %208 = vmatprep.subr.mxu0 0.0
    %209 = vmatpush2.msra.mxu0 0.0
    %210 = vmatprep.subr.mxu0 0.0
    %211 = vmatpush2.msra.mxu0 0.0
    %212 = vmatprep.subr.mxu0 0.0
    %213 = vmatpush2.msra.mxu0 0.0
    %214 = vmatprep.subr.mxu0 0.0
    %215 = vmatpush2.msra.mxu0 0.0
    %216 = vmatprep.subr.mxu0 0.0
    %217 = vmatpush2.msra.mxu0 0.0
    %218 = vmatprep.mubr.f32.mxu0 0.0
    %219 = vmatmul.mubr.f32.gmra.mxu0 %v59
    %v220 = vpop.f32.mrf.mxu0
    %v221 = vadd.f32 0.0, %v220
    %v222 = vpop.f32.mrf.mxu0
    %223 = vmatprep.mubr.f32.mxu0 0.0
    %224 = vmatmul.mubr.f32.gmra.mxu0 %v62
    %v225 = vpop.f32.mrf.mxu0
    %v226 = vadd.f32 0.0, %v225
    %v227 = vpop.f32.mrf.mxu0
    %228 = vmatprep.mubr.f32.mxu0 0.0
    %229 = vmatmul.mubr.f32.gmra.mxu0 %v65
    %v230 = vpop.f32.mrf.mxu0
    %v231 = vadd.f32 0.0, %v230
    %v232 = vpop.f32.mrf.mxu0
    %233 = vmatprep.mubr.f32.mxu0 0.0
    %234 = vmatmul.mubr.f32.gmra.mxu0 %v68
    %v235 = vpop.f32.mrf.mxu0
    %v236 = vadd.f32 0.0, %v235
    %v237 = vpop.f32.mrf.mxu0
    %238 = vmatprep.mubr.f32.mxu0 0.0
    %239 = vmatmul.mubr.f32.gmra.mxu0 %v71
    %v240 = vpop.f32.mrf.mxu0
    %v241 = vadd.f32 0.0, %v240
    %v242 = vpop.f32.mrf.mxu0
    %243 = vmatprep.mubr.f32.mxu0 0.0
    %244 = vmatmul.mubr.f32.gmra.mxu0 %v74
    %v245 = vpop.f32.mrf.mxu0
    %v246 = vadd.f32 0.0, %v245
    %v247 = vpop.f32.mrf.mxu0
    %248 = vmatprep.mubr.f32.mxu0 0.0
    %249 = vmatmul.mubr.f32.gmra.mxu0 %v77
    %v250 = vpop.f32.mrf.mxu0
    %v251 = vadd.f32 0.0, %v250
    %v252 = vpop.f32.mrf.mxu0
    %253 = vmatprep.mubr.f32.mxu0 0.0
    %254 = vmatmul.mubr.f32.gmra.mxu0 %v80
    %v255 = vpop.f32.mrf.mxu0
    %v256 = vadd.f32 0.0, %v255
    %v257 = vpop.f32.mrf.mxu0
    %258 = vmatprep.mubr.f32.mxu0 0.0
    %259 = vmatmul.mubr.f32.gmra.mxu0 %v83
    %v260 = vpop.f32.mrf.mxu0
    %v261 = vadd.f32 0.0, %v260
    %v262 = vpop.f32.mrf.mxu0
    %263 = vmatprep.mubr.f32.mxu0 0.0
    %264 = vmatmul.mubr.f32.gmra.mxu0 %v86
    %v265 = vpop.f32.mrf.mxu0
    %v266 = vadd.f32 0.0, %v265
    %v267 = vpop.f32.mrf.mxu0
    %268 = vmatprep.mubr.f32.mxu0 0.0
    %269 = vmatmul.mubr.f32.gmra.mxu0 %v89
    %v270 = vpop.f32.mrf.mxu0
    %v271 = vadd.f32 0.0, %v270
    %v272 = vpop.f32.mrf.mxu0
    %273 = vmatprep.mubr.f32.mxu0 0.0
    %274 = vmatmul.mubr.f32.gmra.mxu0 %v92
    %v275 = vpop.f32.mrf.mxu0
    %v276 = vadd.f32 0.0, %v275
    %v277 = vpop.f32.mrf.mxu0
    %278 = vmatprep.mubr.f32.mxu0 0.0
    %279 = vmatmul.mubr.f32.gmra.mxu0 %v95
    %v280 = vpop.f32.mrf.mxu0
    %v281 = vadd.f32 0.0, %v280
    %v282 = vpop.f32.mrf.mxu0
    %283 = vmatprep.mubr.f32.mxu0 0.0
    %284 = vmatmul.mubr.f32.gmra.mxu0 %v98
    %v285 = vpop.f32.mrf.mxu0
    %v286 = vadd.f32 0.0, %v285
    %v287 = vpop.f32.mrf.mxu0
    %288 = vmatprep.mubr.f32.mxu0 0.0
    %289 = vmatmul.mubr.f32.gmra.mxu0 %v101
    %v290 = vpop.f32.mrf.mxu0
    %v291 = vadd.f32 0.0, %v290
    %v292 = vpop.f32.mrf.mxu0
    %293 = vmatprep.mubr.f32.mxu0 0.0
    %294 = vmatmul.mubr.f32.gmra.mxu0 %v104
    %v295 = vpop.f32.mrf.mxu0
    %v296 = vadd.f32 0.0, %v295
    %v297 = vpop.f32.mrf.mxu0
    %298 = vmatprep.mubr.f32.mxu0 0.0
    %299 = vmatmul.mubr.f32.gmra.mxu0 %v107
    %v300 = vpop.f32.mrf.mxu0
    %v301 = vadd.f32 0.0, %v300
    %v302 = vpop.f32.mrf.mxu0
    %303 = vmatprep.mubr.f32.mxu0 0.0
    %304 = vmatmul.mubr.f32.gmra.mxu0 %v110
    %v305 = vpop.f32.mrf.mxu0
    %v306 = vadd.f32 0.0, %v305
    %v307 = vpop.f32.mrf.mxu0
    %308 = vmatprep.mubr.f32.mxu0 0.0
    %309 = vmatmul.mubr.f32.gmra.mxu0 %v113
    %v310 = vpop.f32.mrf.mxu0
    %v311 = vadd.f32 0.0, %v310
    %v312 = vpop.f32.mrf.mxu0
    %313 = vmatprep.mubr.f32.mxu0 0.0
    %314 = vmatmul.mubr.f32.gmra.mxu0 %v116
    %v315 = vpop.f32.mrf.mxu0
    %v316 = vadd.f32 0.0, %v315
    %v317 = vpop.f32.mrf.mxu0
    %318 = vmatprep.mubr.f32.mxu0 0.0
    %319 = vmatmul.mubr.f32.gmra.mxu0 %v119
    %v320 = vpop.f32.mrf.mxu0
    %v321 = vadd.f32 0.0, %v320
    %v322 = vpop.f32.mrf.mxu0
    %323 = vmatprep.mubr.f32.mxu0 0.0
    %324 = vmatmul.mubr.f32.gmra.mxu0 %v122
    %v325 = vpop.f32.mrf.mxu0
    %v326 = vadd.f32 0.0, %v325
    %v327 = vpop.f32.mrf.mxu0
    %328 = vmatprep.mubr.f32.mxu0 0.0
    %329 = vmatmul.mubr.f32.gmra.mxu0 %v125
    %v330 = vpop.f32.mrf.mxu0
    %v331 = vadd.f32 0.0, %v330
    %v332 = vpop.f32.mrf.mxu0
    %333 = vmatprep.mubr.f32.mxu0 0.0
    %334 = vmatmul.mubr.f32.gmra.mxu0 %v128
    %v335 = vpop.f32.mrf.mxu0
    %v336 = vadd.f32 0.0, %v335
    %v337 = vpop.f32.mrf.mxu0
    %338 = vmatprep.mubr.f32.mxu0 0.0
    %339 = vmatmul.mubr.f32.gmra.mxu0 %v131
    %v340 = vpop.f32.mrf.mxu0
    %v341 = vadd.f32 0.0, %v340
    %v342 = vpop.f32.mrf.mxu0
    %343 = vmatprep.mubr.f32.mxu0 0.0
    %344 = vmatmul.mubr.f32.gmra.mxu0 %v134
    %v345 = vpop.f32.mrf.mxu0
    %v346 = vadd.f32 0.0, %v345
    %v347 = vpop.f32.mrf.mxu0
    %348 = vmatprep.mubr.f32.mxu0 0.0
    %349 = vmatmul.mubr.f32.gmra.mxu0 %v137
    %v350 = vpop.f32.mrf.mxu0
    %v351 = vadd.f32 0.0, %v350
    %v352 = vpop.f32.mrf.mxu0
    %353 = vmatprep.mubr.f32.mxu0 0.0
    %354 = vmatmul.mubr.f32.gmra.mxu0 %v140
    %v355 = vpop.f32.mrf.mxu0
    %v356 = vadd.f32 0.0, %v355
    %v357 = vpop.f32.mrf.mxu0
    %358 = vmatprep.mubr.f32.mxu0 0.0
    %359 = vmatmul.mubr.f32.gmra.mxu0 %v143
    %v360 = vpop.f32.mrf.mxu0
    %v361 = vadd.f32 0.0, %v360
    %v362 = vpop.f32.mrf.mxu0
    %363 = vmatprep.mubr.f32.mxu0 0.0
    %364 = vmatmul.mubr.f32.gmra.mxu0 %v146
    %v365 = vpop.f32.mrf.mxu0
    %v366 = vadd.f32 0.0, %v365
    %v367 = vpop.f32.mrf.mxu0
    %368 = vmatprep.mubr.f32.mxu0 0.0
    %369 = vmatmul.mubr.f32.gmra.mxu0 %v149
    %v370 = vpop.f32.mrf.mxu0
    %v371 = vadd.f32 0.0, %v370
    %v372 = vpop.f32.mrf.mxu0
    %373 = vmatprep.mubr.f32.mxu0 0.0
    %374 = vmatmul.mubr.f32.gmra.mxu0 %v152
    %v375 = vpop.f32.mrf.mxu0
    %v376 = vadd.f32 0.0, %v375
    %v377 = vpop.f32.mrf.mxu0
    %378 = vdwg.mxu0
    %379 = vst [vmem:[#allocation2] sm:$0xff] %v221
    %380 = vst [vmem:[#allocation2 + $0x8] sm:$0xff] %v226
    %381 = vst [vmem:[#allocation2 + $0x10] sm:$0xff] %v231
    %382 = vst [vmem:[#allocation2 + $0x18] sm:$0xff] %v236
    %383 = vst [vmem:[#allocation2 + $0x20] sm:$0xff] %v241
    %384 = vst [vmem:[#allocation2 + $0x28] sm:$0xff] %v246
    %385 = vst [vmem:[#allocation2 + $0x30] sm:$0xff] %v251
    %386 = vst [vmem:[#allocation2 + $0x38] sm:$0xff] %v256
    %387 = vst [vmem:[#allocation2 + $0x40] sm:$0xff] %v261
    %388 = vst [vmem:[#allocation2 + $0x48] sm:$0xff] %v266
    %389 = vst [vmem:[#allocation2 + $0x50] sm:$0xff] %v271
    %390 = vst [vmem:[#allocation2 + $0x58] sm:$0xff] %v276
    %391 = vst [vmem:[#allocation2 + $0x60] sm:$0xff] %v281
    %392 = vst [vmem:[#allocation2 + $0x68] sm:$0xff] %v286
    %393 = vst [vmem:[#allocation2 + $0x70] sm:$0xff] %v291
    %394 = vst [vmem:[#allocation2 + $0x78] sm:$0xff] %v296
    %395 = vst [vmem:[#allocation2 + $0x80] sm:$0xff] %v301
    %396 = vst [vmem:[#allocation2 + $0x88] sm:$0xff] %v306
    %397 = vst [vmem:[#allocation2 + $0x90] sm:$0xff] %v311
    %398 = vst [vmem:[#allocation2 + $0x98] sm:$0xff] %v316
    %399 = vst [vmem:[#allocation2 + $0xa0] sm:$0xff] %v321
    %400 = vst [vmem:[#allocation2 + $0xa8] sm:$0xff] %v326
    %401 = vst [vmem:[#allocation2 + $0xb0] sm:$0xff] %v331
    %402 = vst [vmem:[#allocation2 + $0xb8] sm:$0xff] %v336
    %403 = vst [vmem:[#allocation2 + $0xc0] sm:$0xff] %v341
    %404 = vst [vmem:[#allocation2 + $0xc8] sm:$0xff] %v346
    %405 = vst [vmem:[#allocation2 + $0xd0] sm:$0xff] %v351
    %406 = vst [vmem:[#allocation2 + $0xd8] sm:$0xff] %v356
    %407 = vst [vmem:[#allocation2 + $0xe0] sm:$0xff] %v361
    %408 = vst [vmem:[#allocation2 + $0xe8] sm:$0xff] %v366
    %409 = vst [vmem:[#allocation2 + $0xf0] sm:$0xff] %v371
    %410 = vst [vmem:[#allocation2 + $0xf8] sm:$0xff] %v376
    %v411 = vld [vmem:[%s2] sm:$0x1]
    %v413 = vlaneseq
    %v414 = vshrl.u32 %v413, 7
    %v415 = vsub.s32 0, %v414
    %v416 = vrot.slane %v411, %v415
    %v418 = vmul.f32 %v221, %v416
    %v419 = vmul.f32 %v226, %v416
    %v420 = vmul.f32 %v231, %v416
    %v421 = vmul.f32 %v236, %v416
    %v422 = vmul.f32 %v241, %v416
    %v423 = vmul.f32 %v246, %v416
    %v424 = vmul.f32 %v251, %v416
    %v425 = vmul.f32 %v256, %v416
    %v426 = vmul.f32 %v261, %v416
    %v427 = vmul.f32 %v266, %v416
    %v428 = vmul.f32 %v271, %v416
    %v429 = vmul.f32 %v276, %v416
    %v430 = vmul.f32 %v281, %v416
    %v431 = vmul.f32 %v286, %v416
    %v432 = vmul.f32 %v291, %v416
    %v433 = vmul.f32 %v296, %v416
    %v434 = vmul.f32 %v301, %v416
    %v435 = vmul.f32 %v306, %v416
    %v436 = vmul.f32 %v311, %v416
    %v437 = vmul.f32 %v316, %v416
    %v438 = vmul.f32 %v321, %v416
    %v439 = vmul.f32 %v326, %v416
    %v440 = vmul.f32 %v331, %v416
    %v441 = vmul.f32 %v336, %v416
    %v442 = vmul.f32 %v341, %v416
    %v443 = vmul.f32 %v346, %v416
    %v444 = vmul.f32 %v351, %v416
    %v445 = vmul.f32 %v356, %v416
    %v446 = vmul.f32 %v361, %v416
    %v447 = vmul.f32 %v366, %v416
    %v448 = vmul.f32 %v371, %v416
    %v449 = vmul.f32 %v376, %v416
    %450 = vadd.xlane.f32.xlu0 %v418
    %v451 = vpop.xlane.xlu0 %450
    %452 = vadd.xlane.f32.xlu0 %v419
    %v453 = vpop.xlane.xlu0 %452
    %454 = vadd.xlane.f32.xlu0 %v420
    %v455 = vpop.xlane.xlu0 %454
    %456 = vadd.xlane.f32.xlu0 %v421
    %v457 = vpop.xlane.xlu0 %456
    %458 = vadd.xlane.f32.xlu0 %v422
    %v459 = vpop.xlane.xlu0 %458
    %460 = vadd.xlane.f32.xlu0 %v423
    %v461 = vpop.xlane.xlu0 %460
    %462 = vadd.xlane.f32.xlu0 %v424
    %v463 = vpop.xlane.xlu0 %462
    %464 = vadd.xlane.f32.xlu0 %v425
    %v465 = vpop.xlane.xlu0 %464
    %466 = vadd.xlane.f32.xlu0 %v426
    %v467 = vpop.xlane.xlu0 %466
    %468 = vadd.xlane.f32.xlu0 %v427
    %v469 = vpop.xlane.xlu0 %468
    %470 = vadd.xlane.f32.xlu0 %v428
    %v471 = vpop.xlane.xlu0 %470
    %472 = vadd.xlane.f32.xlu0 %v429
    %v473 = vpop.xlane.xlu0 %472
    %474 = vadd.xlane.f32.xlu0 %v430
    %v475 = vpop.xlane.xlu0 %474
    %476 = vadd.xlane.f32.xlu0 %v431
    %v477 = vpop.xlane.xlu0 %476
    %478 = vadd.xlane.f32.xlu0 %v432
    %v479 = vpop.xlane.xlu0 %478
    %480 = vadd.xlane.f32.xlu0 %v433
    %v481 = vpop.xlane.xlu0 %480
    %482 = vadd.xlane.f32.xlu0 %v434
    %v483 = vpop.xlane.xlu0 %482
    %484 = vadd.xlane.f32.xlu0 %v435
    %v485 = vpop.xlane.xlu0 %484
    %486 = vadd.xlane.f32.xlu0 %v436
    %v487 = vpop.xlane.xlu0 %486
    %488 = vadd.xlane.f32.xlu0 %v437
    %v489 = vpop.xlane.xlu0 %488
    %490 = vadd.xlane.f32.xlu0 %v438
    %v491 = vpop.xlane.xlu0 %490
    %492 = vadd.xlane.f32.xlu0 %v439
    %v493 = vpop.xlane.xlu0 %492
    %494 = vadd.xlane.f32.xlu0 %v440
    %v495 = vpop.xlane.xlu0 %494
    %496 = vadd.xlane.f32.xlu0 %v441
    %v497 = vpop.xlane.xlu0 %496
    %498 = vadd.xlane.f32.xlu0 %v442
    %v499 = vpop.xlane.xlu0 %498
    %500 = vadd.xlane.f32.xlu0 %v443
    %v501 = vpop.xlane.xlu0 %500
    %502 = vadd.xlane.f32.xlu0 %v444
    %v503 = vpop.xlane.xlu0 %502
    %504 = vadd.xlane.f32.xlu0 %v445
    %v505 = vpop.xlane.xlu0 %504
    %506 = vadd.xlane.f32.xlu0 %v446
    %v507 = vpop.xlane.xlu0 %506
    %508 = vadd.xlane.f32.xlu0 %v447
    %v509 = vpop.xlane.xlu0 %508
    %510 = vadd.xlane.f32.xlu0 %v448
    %v511 = vpop.xlane.xlu0 %510
    %512 = vadd.xlane.f32.xlu0 %v449
    %v513 = vpop.xlane.xlu0 %512
    %vm514 = vcmask 7168
    %515 = vst.msk [vmem:[%s5] sm:$0xff] %vm514, %v451
    %516 = vst.msk [vmem:[%s5 + $0x8] sm:$0xff] %vm514, %v453
    %517 = vst.msk [vmem:[%s5 + $0x10] sm:$0xff] %vm514, %v455
    %518 = vst.msk [vmem:[%s5 + $0x18] sm:$0xff] %vm514, %v457
    %519 = vst.msk [vmem:[%s5 + $0x20] sm:$0xff] %vm514, %v459
    %520 = vst.msk [vmem:[%s5 + $0x28] sm:$0xff] %vm514, %v461
    %521 = vst.msk [vmem:[%s5 + $0x30] sm:$0xff] %vm514, %v463
    %522 = vst.msk [vmem:[%s5 + $0x38] sm:$0xff] %vm514, %v465
    %523 = vst.msk [vmem:[%s5 + $0x40] sm:$0xff] %vm514, %v467
    %524 = vst.msk [vmem:[%s5 + $0x48] sm:$0xff] %vm514, %v469
    %525 = vst.msk [vmem:[%s5 + $0x50] sm:$0xff] %vm514, %v471
    %526 = vst.msk [vmem:[%s5 + $0x58] sm:$0xff] %vm514, %v473
    %527 = vst.msk [vmem:[%s5 + $0x60] sm:$0xff] %vm514, %v475
    %528 = vst.msk [vmem:[%s5 + $0x68] sm:$0xff] %vm514, %v477
    %529 = vst.msk [vmem:[%s5 + $0x70] sm:$0xff] %vm514, %v479
    %530 = vst.msk [vmem:[%s5 + $0x78] sm:$0xff] %vm514, %v481
    %531 = vst.msk [vmem:[%s5 + $0x80] sm:$0xff] %vm514, %v483
    %532 = vst.msk [vmem:[%s5 + $0x88] sm:$0xff] %vm514, %v485
    %533 = vst.msk [vmem:[%s5 + $0x90] sm:$0xff] %vm514, %v487
    %534 = vst.msk [vmem:[%s5 + $0x98] sm:$0xff] %vm514, %v489
    %535 = vst.msk [vmem:[%s5 + $0xa0] sm:$0xff] %vm514, %v491
    %536 = vst.msk [vmem:[%s5 + $0xa8] sm:$0xff] %vm514, %v493
    %537 = vst.msk [vmem:[%s5 + $0xb0] sm:$0xff] %vm514, %v495
    %538 = vst.msk [vmem:[%s5 + $0xb8] sm:$0xff] %vm514, %v497
    %539 = vst.msk [vmem:[%s5 + $0xc0] sm:$0xff] %vm514, %v499
    %540 = vst.msk [vmem:[%s5 + $0xc8] sm:$0xff] %vm514, %v501
    %541 = vst.msk [vmem:[%s5 + $0xd0] sm:$0xff] %vm514, %v503
    %542 = vst.msk [vmem:[%s5 + $0xd8] sm:$0xff] %vm514, %v505
    %543 = vst.msk [vmem:[%s5 + $0xe0] sm:$0xff] %vm514, %v507
    %544 = vst.msk [vmem:[%s5 + $0xe8] sm:$0xff] %vm514, %v509
    %545 = vst.msk [vmem:[%s5 + $0xf0] sm:$0xff] %vm514, %v511
    %546 = vst.msk [vmem:[%s5 + $0xf8] sm:$0xff] %vm514, %v513
    %v547 = vld [vmem:[%s3] sm:$0x1]
    %v549 = vlaneseq
    %v550 = vshrl.u32 %v549, 7
    %v551 = vsub.s32 0, %v550
    %v552 = vrot.slane %v547, %v551
    %v554 = vmul.f32 %v221, %v552
    %v555 = vmul.f32 %v226, %v552
    %v556 = vmul.f32 %v231, %v552
    %v557 = vmul.f32 %v236, %v552
    %v558 = vmul.f32 %v241, %v552
    %v559 = vmul.f32 %v246, %v552
    %v560 = vmul.f32 %v251, %v552
    %v561 = vmul.f32 %v256, %v552
    %v562 = vmul.f32 %v261, %v552
    %v563 = vmul.f32 %v266, %v552
    %v564 = vmul.f32 %v271, %v552
    %v565 = vmul.f32 %v276, %v552
    %v566 = vmul.f32 %v281, %v552
    %v567 = vmul.f32 %v286, %v552
    %v568 = vmul.f32 %v291, %v552
    %v569 = vmul.f32 %v296, %v552
    %v570 = vmul.f32 %v301, %v552
    %v571 = vmul.f32 %v306, %v552
    %v572 = vmul.f32 %v311, %v552
    %v573 = vmul.f32 %v316, %v552
    %v574 = vmul.f32 %v321, %v552
    %v575 = vmul.f32 %v326, %v552
    %v576 = vmul.f32 %v331, %v552
    %v577 = vmul.f32 %v336, %v552
    %v578 = vmul.f32 %v341, %v552
    %v579 = vmul.f32 %v346, %v552
    %v580 = vmul.f32 %v351, %v552
    %v581 = vmul.f32 %v356, %v552
    %v582 = vmul.f32 %v361, %v552
    %v583 = vmul.f32 %v366, %v552
    %v584 = vmul.f32 %v371, %v552
    %v585 = vmul.f32 %v376, %v552
    %586 = vadd.xlane.f32.xlu0 %v554
    %v587 = vpop.xlane.xlu0 %586
    %588 = vadd.xlane.f32.xlu0 %v555
    %v589 = vpop.xlane.xlu0 %588
    %590 = vadd.xlane.f32.xlu0 %v556
    %v591 = vpop.xlane.xlu0 %590
    %592 = vadd.xlane.f32.xlu0 %v557
    %v593 = vpop.xlane.xlu0 %592
    %594 = vadd.xlane.f32.xlu0 %v558
    %v595 = vpop.xlane.xlu0 %594
    %596 = vadd.xlane.f32.xlu0 %v559
    %v597 = vpop.xlane.xlu0 %596
    %598 = vadd.xlane.f32.xlu0 %v560
    %v599 = vpop.xlane.xlu0 %598
    %600 = vadd.xlane.f32.xlu0 %v561
    %v601 = vpop.xlane.xlu0 %600
    %602 = vadd.xlane.f32.xlu0 %v562
    %v603 = vpop.xlane.xlu0 %602
    %604 = vadd.xlane.f32.xlu0 %v563
    %v605 = vpop.xlane.xlu0 %604
    %606 = vadd.xlane.f32.xlu0 %v564
    %v607 = vpop.xlane.xlu0 %606
    %608 = vadd.xlane.f32.xlu0 %v565
    %v609 = vpop.xlane.xlu0 %608
    %610 = vadd.xlane.f32.xlu0 %v566
    %v611 = vpop.xlane.xlu0 %610
    %612 = vadd.xlane.f32.xlu0 %v567
    %v613 = vpop.xlane.xlu0 %612
    %614 = vadd.xlane.f32.xlu0 %v568
    %v615 = vpop.xlane.xlu0 %614
    %616 = vadd.xlane.f32.xlu0 %v569
    %v617 = vpop.xlane.xlu0 %616
    %618 = vadd.xlane.f32.xlu0 %v570
    %v619 = vpop.xlane.xlu0 %618
    %620 = vadd.xlane.f32.xlu0 %v571
    %v621 = vpop.xlane.xlu0 %620
    %622 = vadd.xlane.f32.xlu0 %v572
    %v623 = vpop.xlane.xlu0 %622
    %624 = vadd.xlane.f32.xlu0 %v573
    %v625 = vpop.xlane.xlu0 %624
    %626 = vadd.xlane.f32.xlu0 %v574
    %v627 = vpop.xlane.xlu0 %626
    %628 = vadd.xlane.f32.xlu0 %v575
    %v629 = vpop.xlane.xlu0 %628
    %630 = vadd.xlane.f32.xlu0 %v576
    %v631 = vpop.xlane.xlu0 %630
    %632 = vadd.xlane.f32.xlu0 %v577
    %v633 = vpop.xlane.xlu0 %632
    %634 = vadd.xlane.f32.xlu0 %v578
    %v635 = vpop.xlane.xlu0 %634
    %636 = vadd.xlane.f32.xlu0 %v579
    %v637 = vpop.xlane.xlu0 %636
    %638 = vadd.xlane.f32.xlu0 %v580
    %v639 = vpop.xlane.xlu0 %638
    %640 = vadd.xlane.f32.xlu0 %v581
    %v641 = vpop.xlane.xlu0 %640
    %642 = vadd.xlane.f32.xlu0 %v582
    %v643 = vpop.xlane.xlu0 %642
    %644 = vadd.xlane.f32.xlu0 %v583
    %v645 = vpop.xlane.xlu0 %644
    %646 = vadd.xlane.f32.xlu0 %v584
    %v647 = vpop.xlane.xlu0 %646
    %648 = vadd.xlane.f32.xlu0 %v585
    %v649 = vpop.xlane.xlu0 %648
    %650 = vst.msk [vmem:[%s6] sm:$0xff] %vm514, %v587
    %651 = vst.msk [vmem:[%s6 + $0x8] sm:$0xff] %vm514, %v589
    %652 = vst.msk [vmem:[%s6 + $0x10] sm:$0xff] %vm514, %v591
    %653 = vst.msk [vmem:[%s6 + $0x18] sm:$0xff] %vm514, %v593
    %654 = vst.msk [vmem:[%s6 + $0x20] sm:$0xff] %vm514, %v595
    %655 = vst.msk [vmem:[%s6 + $0x28] sm:$0xff] %vm514, %v597
    %656 = vst.msk [vmem:[%s6 + $0x30] sm:$0xff] %vm514, %v599
    %657 = vst.msk [vmem:[%s6 + $0x38] sm:$0xff] %vm514, %v601
    %658 = vst.msk [vmem:[%s6 + $0x40] sm:$0xff] %vm514, %v603
    %659 = vst.msk [vmem:[%s6 + $0x48] sm:$0xff] %vm514, %v605
    %660 = vst.msk [vmem:[%s6 + $0x50] sm:$0xff] %vm514, %v607
    %661 = vst.msk [vmem:[%s6 + $0x58] sm:$0xff] %vm514, %v609
    %662 = vst.msk [vmem:[%s6 + $0x60] sm:$0xff] %vm514, %v611
    %663 = vst.msk [vmem:[%s6 + $0x68] sm:$0xff] %vm514, %v613
    %664 = vst.msk [vmem:[%s6 + $0x70] sm:$0xff] %vm514, %v615
    %665 = vst.msk [vmem:[%s6 + $0x78] sm:$0xff] %vm514, %v617
    %666 = vst.msk [vmem:[%s6 + $0x80] sm:$0xff] %vm514, %v619
    %667 = vst.msk [vmem:[%s6 + $0x88] sm:$0xff] %vm514, %v621
    %668 = vst.msk [vmem:[%s6 + $0x90] sm:$0xff] %vm514, %v623
    %669 = vst.msk [vmem:[%s6 + $0x98] sm:$0xff] %vm514, %v625
    %670 = vst.msk [vmem:[%s6 + $0xa0] sm:$0xff] %vm514, %v627
    %671 = vst.msk [vmem:[%s6 + $0xa8] sm:$0xff] %vm514, %v629
    %672 = vst.msk [vmem:[%s6 + $0xb0] sm:$0xff] %vm514, %v631
    %673 = vst.msk [vmem:[%s6 + $0xb8] sm:$0xff] %vm514, %v633
    %674 = vst.msk [vmem:[%s6 + $0xc0] sm:$0xff] %vm514, %v635
    %675 = vst.msk [vmem:[%s6 + $0xc8] sm:$0xff] %vm514, %v637
    %676 = vst.msk [vmem:[%s6 + $0xd0] sm:$0xff] %vm514, %v639
    %677 = vst.msk [vmem:[%s6 + $0xd8] sm:$0xff] %vm514, %v641
    %678 = vst.msk [vmem:[%s6 + $0xe0] sm:$0xff] %vm514, %v643
    %679 = vst.msk [vmem:[%s6 + $0xe8] sm:$0xff] %vm514, %v645
    %680 = vst.msk [vmem:[%s6 + $0xf0] sm:$0xff] %vm514, %v647
    %681 = vst.msk [vmem:[%s6 + $0xf8] sm:$0xff] %vm514, %v649
    // Predicated region
    $region18: #{tpu_custom_call.1} parent=1 // pred_check
      _
    $region19: #{tpu_custom_call.1} parent=1 // pred_check_branch
      %683 = sbr.rel (0) target = $region21
    $region20: #{tpu_custom_call.1} parent=1 // pred_region
      %s685 = ssub.s32 4096, 4096
      %686 = vsyncadd [#allocation3], %s685
      %s687 = sshll.u32 [#allocation2], 4
      %s688 = int_to_ptr.vmem [resolvable:$true] %s687
      %693 = dma.vmem_to_hbm [thread:$0]  %s688, 4096, %s4, [#allocation3], 128, 128, 8
    $region21: #{tpu_custom_call.1} parent=1 // pred_fallthru
      _
    // Predicated region
    $region22: #{tpu_custom_call.1} parent=1 // pred_check
      _
    $region23: #{tpu_custom_call.1} parent=1 // pred_check_branch
      %695 = sbr.rel (0) target = $region25
    $region24: #{tpu_custom_call.1} parent=1 // pred_region
      _
    $region25: #{tpu_custom_call.1} parent=1 // pred_fallthru
      _
    // Predicated region
    $region26: #{tpu_custom_call.1} parent=1 // pred_check
      _
    $region27: #{tpu_custom_call.1} parent=1 // pred_check_branch
      %697 = sbr.rel (0) target = $region29
    $region28: #{tpu_custom_call.1} parent=1 // pred_region
      _
    $region29: #{tpu_custom_call.1} parent=1 // pred_fallthru
      _
    // Predicated region
    $region30: #{tpu_custom_call.1} parent=1 // pred_check
      _
    $region31: #{tpu_custom_call.1} parent=1 // pred_check_branch
      %699 = sbr.rel (0) target = $region33
    $region32: #{tpu_custom_call.1} parent=1 // pred_region
      %700 = dma.done [#allocation3], 4096
    $region33: #{tpu_custom_call.1} parent=1 // pred_fallthru
      _
    // Predicated region
    $region34: #{tpu_custom_call.1} parent=1 // pred_check
      _
    $region35: #{tpu_custom_call.1} parent=1 // pred_check_branch
      %702 = sbr.rel (0) target = $region37
    $region36: #{tpu_custom_call.1} parent=1 // pred_region
      _
    $region37: #{tpu_custom_call.1} parent=1 // pred_fallthru
      _
    // Predicated region
    $region38: #{tpu_custom_call.1} parent=1 // pred_check
      _
    $region39: #{tpu_custom_call.1} parent=1 // pred_check_branch
      %704 = sbr.rel (0) target = $region41
    $region40: #{tpu_custom_call.1} parent=1 // pred_region
      _
    $region41: #{tpu_custom_call.1} parent=1 // pred_fallthru
      _
    %705 = vsyncpa [#allocation3], 1

</llo_original>
